<compile_context>
chip_gen: v5e
topology: v5e:2x2
jax: 0.10.0
libtpu: 0.0.40
codegen_flags: <defaults>
</compile_context>

<pallas_src>
import math

import jax
import jax.numpy as jnp
from jax.experimental import pallas as pl
from jax.experimental.pallas import tpu as pltpu


def _round_up(x, m):
    return ((x + m - 1) // m) * m


def _pick_tiles(in_f, out_f, max_tile=512):
    """Tile sizes + padded dims, shared by init (padding) and the wrapper (grid)."""
    # K axis: a single tile up to 2*max_tile avoids tiny-reduction grids.
    in_128 = _round_up(in_f, 128)
    tk = in_128 if in_128 <= 2 * max_tile else max_tile
    in_p = _round_up(in_f, tk)
    # N axis.
    out_128 = _round_up(out_f, 128)
    tn = out_128 if out_128 <= max_tile else max_tile
    # v7x: keep >=2 blocks on the parallel N axis so both TensorCores get work.
    if out_128 // tn < 2 and out_128 >= 256:
        tn = _round_up(out_128 // 2, 128)
    out_p = _round_up(out_f, tn)
    return tk, tn, in_p, out_p


# -----------------------------------------------------------------------------
# Kernels
# -----------------------------------------------------------------------------
def _make_train_kernel(tk, x_resident):
    """y = x @ mu + ((x * eps_in) @ sigma) * eps_out + (b_mu + b_sigma * eps_out)."""

    def kernel(x_ref, ein_ref, wmu_ref, wsig_ref, eout_ref, bmu_ref, bsig_ref,
               o_ref, acc_ref):
        k = pl.program_id(1)

        @pl.when(k == 0)
        def _():
            acc_ref[...] = jnp.zeros_like(acc_ref)

        if x_resident:
            ks = pl.multiple_of(k * tk, 128)
            x = x_ref[:, pl.ds(ks, tk)]          # (b_p, tk) slice of resident x
            ein = ein_ref[:, pl.ds(ks, tk)]      # (1, tk)   slice of resident row
        else:
            x = x_ref[...]
            ein = ein_ref[...]

        wd = wmu_ref.dtype                       # bf16 (or f32) weight dtype
        xm = x.astype(wd)
        xe = (x * ein).astype(wd)                # factorized-noise left factor

        mu_part = jnp.dot(xm, wmu_ref[...], preferred_element_type=jnp.float32)
        sg_part = jnp.dot(xe, wsig_ref[...], preferred_element_type=jnp.float32)
        acc_ref[...] += mu_part + sg_part * eout_ref[...]   # eout const in k

        @pl.when(k == pl.num_programs(1) - 1)
        def _():
            bias = bmu_ref[...] + bsig_ref[...] * eout_ref[...]   # (1, tn)
            o_ref[...] = (acc_ref[...] + bias).astype(o_ref.dtype)

    return kernel


def _make_eval_kernel(tk, x_resident):
    """Eval path: plain linear with mu weights / bias only."""

    def kernel(x_ref, wmu_ref, bmu_ref, o_ref, acc_ref):
        k = pl.program_id(1)

        @pl.when(k == 0)
        def _():
            acc_ref[...] = jnp.zeros_like(acc_ref)

        if x_resident:
            ks = pl.multiple_of(k * tk, 128)
            x = x_ref[:, pl.ds(ks, tk)]
        else:
            x = x_ref[...]

        acc_ref[...] += jnp.dot(x.astype(wmu_ref.dtype), wmu_ref[...],
                                preferred_element_type=jnp.float32)

        @pl.when(k == pl.num_programs(1) - 1)
        def _():
            o_ref[...] = (acc_ref[...] + bmu_ref[...]).astype(o_ref.dtype)

    return kernel


# -----------------------------------------------------------------------------
# Wrapper
# -----------------------------------------------------------------------------
def noisy_linear(x, params, *, training=True):
    """Pallas NoisyLinear forward.  `params` comes from init_noisy_linear_params
    (weights already padded, K-major, bf16-at-rest; only x is padded here)."""
    B, in_f = x.shape
    assert in_f == params["in_features"]
    out_f = params["out_features"]
    tk, tn = params["tk"], params["tn"]
    in_p, out_p = params["in_p"], params["out_p"]

    b_p = _round_up(B, 8)
    if b_p != B or in_p != in_f:
        x_p = jnp.pad(x, ((0, b_p - B), (0, in_p - in_f)))
    else:
        x_p = x

    grid = (out_p // tn, in_p // tk)    # (parallel N, reduction K last)
    n_k = grid[1]

    # Keep x (and the eps_in row) resident in VMEM when small, so x is not
    # re-streamed from HBM once per N tile.
    x_resident = n_k == 1 or (b_p * in_p * 4) <= (8 << 20)
    if x_resident:
        x_spec = pl.BlockSpec((b_p, in_p), lambda n, k: (0, 0))
        ein_spec = pl.BlockSpec((1, in_p), lambda n, k: (0, 0))
    else:
        x_spec = pl.BlockSpec((b_p, tk), lambda n, k: (0, k))
        ein_spec = pl.BlockSpec((1, tk), lambda n, k: (0, k))

    w_spec = pl.BlockSpec((tk, tn), lambda n, k: (k, n))
    row_spec = pl.BlockSpec((1, tn), lambda n, k: (0, n))    # per-N vectors
    out_spec = pl.BlockSpec((b_p, tn), lambda n, k: (0, n))

    # VMEM footprint estimate -> explicit scoped limit (v5e default is 16 MiB,
    # v7x physical is only 64 MiB, so cap there).
    w_bytes = params["weight_mu_t"].dtype.itemsize
    n_w = 2 if training else 1
    est = (n_w * 2 * tk * tn * w_bytes                    # double-buffered W tiles
           + (b_p * in_p * 4 if x_resident else 2 * b_p * tk * 4)
           + (4 * in_p if x_resident else 8 * tk)         # eps_in row
           + 3 * b_p * tn * 4                             # out double-buffer + acc
           + 6 * 2 * tn * 4)                              # eps_out / bias rows
    vmem_limit = int(min(64 << 20, max(32 << 20, 2 * est)))

    compiler_params = pltpu.CompilerParams(
        dimension_semantics=("parallel", "arbitrary"),
        vmem_limit_bytes=vmem_limit)

    if training:
        out = pl.pallas_call(
            _make_train_kernel(tk, x_resident),
            out_shape=jax.ShapeDtypeStruct((b_p, out_p), x.dtype),
            grid_spec=pltpu.PrefetchScalarGridSpec(
                num_scalar_prefetch=0,
                grid=grid,
                in_specs=[x_spec, ein_spec, w_spec, w_spec, row_spec,
                          row_spec, row_spec],
                out_specs=out_spec,
                scratch_shapes=[pltpu.VMEM((b_p, tn), jnp.float32)],
            ),
            compiler_params=compiler_params,
        )(x_p, params["eps_in"], params["weight_mu_t"], params["weight_sigma_t"],
          params["eps_out"], params["bias_mu"], params["bias_sigma"])
    else:
        out = pl.pallas_call(
            _make_eval_kernel(tk, x_resident),
            out_shape=jax.ShapeDtypeStruct((b_p, out_p), x.dtype),
            grid_spec=pltpu.PrefetchScalarGridSpec(
                num_scalar_prefetch=0,
                grid=grid,
                in_specs=[x_spec, w_spec, row_spec],
                out_specs=out_spec,
                scratch_shapes=[pltpu.VMEM((b_p, tn), jnp.float32)],
            ),
            compiler_params=compiler_params,
        )(x_p, params["weight_mu_t"], params["bias_mu"])

    return out[:B, :out_f]


# -----------------------------------------------------------------------------
# Parameter / noise init (mirrors the PyTorch module; pads ONCE here)
# -----------------------------------------------------------------------------
def _scale_noise(key, size):
    # PyTorch: x = randn(size); return x.sign() * sqrt(|x|)
    x = jax.random.normal(key, (size,), dtype=jnp.float32)
    return jnp.sign(x) * jnp.sqrt(jnp.abs(x))


def init_noisy_linear_params(key, in_features, out_features, sigma_init=0.5,
                             *, param_dtype=jnp.bfloat16, max_tile=512):
    k_wmu, k_bmu, k_ein, k_eout = jax.random.split(key, 4)
    mu_range = 1.0 / math.sqrt(in_features)
    tk, tn, in_p, out_p = _pick_tiles(in_features, out_features, max_tile)

    weight_mu = jax.random.uniform(
        k_wmu, (out_features, in_features), jnp.float32,
        minval=-mu_range, maxval=mu_range)
    weight_sigma = jnp.full((out_features, in_features),
                            sigma_init / math.sqrt(in_features), jnp.float32)
    bias_mu = jax.random.uniform(
        k_bmu, (out_features,), jnp.float32, minval=-mu_range, maxval=mu_range)
    bias_sigma = jnp.full((out_features,),
                          sigma_init / math.sqrt(out_features), jnp.float32)

    def pad_w(w):
        # (out, in) -> K-major (in_p, out_p), zero-padded once, param_dtype at rest.
        w_t = jnp.pad(w.T, ((0, in_p - in_features), (0, out_p - out_features)))
        return w_t.astype(param_dtype)

    def pad_row(v, p):
        return jnp.pad(v, (0, p - v.shape[0])).reshape(1, p).astype(jnp.float32)

    eps_in = _scale_noise(k_ein, in_features)
    eps_out = _scale_noise(k_eout, out_features)   # == bias_epsilon

    return dict(
        in_features=in_features, out_features=out_features,
        tk=tk, tn=tn, in_p=in_p, out_p=out_p,
        weight_mu_t=pad_w(weight_mu), weight_sigma_t=pad_w(weight_sigma),
        bias_mu=pad_row(bias_mu, out_p), bias_sigma=pad_row(bias_sigma, out_p),
        eps_in=pad_row(eps_in, in_p), eps_out=pad_row(eps_out, out_p),
    )


def reset_noise(params, key):
    """Fresh factorized noise (PyTorch reset_noise); plain-JAX param management."""
    k_in, k_out = jax.random.split(key)
    new = dict(params)
    new["eps_in"] = jnp.pad(_scale_noise(k_in, params["in_features"]),
                            (0, params["in_p"] - params["in_features"])
                            ).reshape(1, params["in_p"])
    new["eps_out"] = jnp.pad(_scale_noise(k_out, params["out_features"]),
                             (0, params["out_p"] - params["out_features"])
                             ).reshape(1, params["out_p"])
    return new


# -----------------------------------------------------------------------------
# Self-test
# -----------------------------------------------------------------------------
if __name__ == "__main__":
    key = jax.random.PRNGKey(0)
    k_params, k_x = jax.random.split(key)

    batch, in_features, out_features = 4, 32, 64
    x = jax.random.normal(k_x, (batch, in_features), dtype=jnp.float32)

    def reference(x, p, training):
        w_mu = p["weight_mu_t"][:in_features, :out_features].astype(jnp.float32).T
        w_sig = p["weight_sigma_t"][:in_features, :out_features].astype(jnp.float32).T
        e_in = p["eps_in"][0, :in_features]
        e_out = p["eps_out"][0, :out_features]
        b_mu = p["bias_mu"][0, :out_features]
        b_sig = p["bias_sigma"][0, :out_features]
        if training:
            w = w_mu + w_sig * jnp.outer(e_out, e_in)
            b = b_mu + b_sig * e_out
        else:
            w, b = w_mu, b_mu
        return x @ w.T + b

    # ---- exact-parity path: f32 params (PyTorch-f32 semantics, tight tol) ----
    p32 = init_noisy_linear_params(k_params, in_features, out_features,
                                   param_dtype=jnp.float32)
    y_tr32 = jax.block_until_ready(noisy_linear(x, p32, training=True))
    y_ev32 = jax.block_until_ready(noisy_linear(x, p32, training=False))
    assert y_tr32.shape == (batch, out_features)
    assert y_ev32.shape == (batch, out_features)
    assert jnp.allclose(y_tr32, reference(x, p32, True), atol=1e-5, rtol=1e-5)
    assert jnp.allclose(y_ev32, reference(x, p32, False), atol=1e-5, rtol=1e-5)

    # ---- perf path: bf16 weights at rest (default), relaxed tolerance ----
    pbf = init_noisy_linear_params(k_params, in_features, out_features)
    y_tr = jax.block_until_ready(noisy_linear(x, pbf, training=True))
    y_ev = jax.block_until_ready(noisy_linear(x, pbf, training=False))
    assert y_tr.shape == (batch, out_features)
    assert y_ev.shape == (batch, out_features)
    assert jnp.allclose(y_tr, reference(x, pbf, True), atol=5e-2, rtol=5e-2)
    assert jnp.allclose(y_ev, reference(x, pbf, False), atol=5e-2, rtol=5e-2)

    print("KERNEL_OK")
</pallas_src>

<mosaic_0001>
module attributes {stable_mosaic.version = 11 : i64} {
  func.func @kernel(%arg0: i32, %arg1: i32, %arg2: memref<8x128xf32, #tpu.memory_space<vmem>>, %arg3: memref<1x128xf32, #tpu.memory_space<vmem>>, %arg4: memref<128x128xf32, #tpu.memory_space<vmem>>, %arg5: memref<128x128xf32, #tpu.memory_space<vmem>>, %arg6: memref<1x128xf32, #tpu.memory_space<vmem>>, %arg7: memref<1x128xf32, #tpu.memory_space<vmem>>, %arg8: memref<1x128xf32, #tpu.memory_space<vmem>>, %arg9: memref<8x128xf32, #tpu.memory_space<vmem>>, %arg10: memref<8x128xf32, #tpu.memory_space<vmem>>) attributes {dimension_semantics = [#tpu.dimension_semantics<parallel>, #tpu.dimension_semantics<arbitrary>], iteration_bounds = array<i64: 1, 1>, scalar_prefetch = 0 : i64, scratch_operands = 1 : i64, tpu.core_type = #tpu.core_type<tc>, window_params = [{pipeline_mode = #tpu.pipeline_mode<synchronous>, transform_indices = @transform_0, window_bounds = array<i64: 8, 128>}, {pipeline_mode = #tpu.pipeline_mode<synchronous>, transform_indices = @transform_1, window_bounds = array<i64: 1, 128>}, {transform_indices = @transform_2, window_bounds = array<i64: 128, 128>}, {transform_indices = @transform_3, window_bounds = array<i64: 128, 128>}, {transform_indices = @transform_4, window_bounds = array<i64: 1, 128>}, {transform_indices = @transform_5, window_bounds = array<i64: 1, 128>}, {transform_indices = @transform_6, window_bounds = array<i64: 1, 128>}, {transform_indices = @transform_7, window_bounds = array<i64: 8, 128>}]} {
    %c0_i32 = arith.constant 0 : i32
    %0 = arith.cmpi eq, %arg1, %c0_i32 : i32
    %1 = arith.extui %0 : i1 to i32
    %c0_i32_0 = arith.constant 0 : i32
    %2 = arith.cmpi ne, %1, %c0_i32_0 : i32
    scf.if %2 {
      %cst_15 = arith.constant 0.000000e+00 : f32
      %25 = vector.broadcast %cst_15 : f32 to vector<8x128xf32>
      %c0_16 = arith.constant 0 : index
      %c0_17 = arith.constant 0 : index
      %26 = vector.load %arg10[%c0_16, %c0_17] : memref<8x128xf32, #tpu.memory_space<vmem>>, vector<8x128xf32>
      tpu.vector_store %arg10[%c0_16, %c0_17], %25 {strides = array<i32>} : memref<8x128xf32, #tpu.memory_space<vmem>>, vector<8x128xf32>,
    } else {
    }
    %c128_i32 = arith.constant 128 : i32
    %3 = arith.muli %arg1, %c128_i32 : i32
    %4 = tpu.assume_multiple %3, 128 : i32
    %c0 = arith.constant 0 : index
    %5 = arith.index_cast %4 : i32 to index
    %6 = vector.load %arg2[%c0, %5] : memref<8x128xf32, #tpu.memory_space<vmem>>, vector<8x128xf32>
    %c0_1 = arith.constant 0 : index
    %7 = arith.index_cast %4 : i32 to index
    %8 = vector.load %arg3[%c0_1, %7] : memref<1x128xf32, #tpu.memory_space<vmem>>, vector<1x128xf32>
    %9 = vector.broadcast %8 : vector<1x128xf32> to vector<8x128xf32>
    %10 = arith.mulf %6, %9 : vector<8x128xf32>
    %c0_2 = arith.constant 0 : index
    %c0_3 = arith.constant 0 : index
    %11 = vector.load %arg4[%c0_2, %c0_3] : memref<128x128xf32, #tpu.memory_space<vmem>>, vector<128x128xf32>
    %cst = arith.constant dense<0.000000e+00> : vector<8x128xf32>
    %12 = tpu.matmul %6, %11, %cst {dimension_numbers = #tpu.dot_dimension_numbers<[1], [0], [0], [1], [0, 0, 1, 1], [], []>} : vector<8x128xf32>, vector<128x128xf32>, vector<8x128xf32> -> vector<8x128xf32>
    %c0_4 = arith.constant 0 : index
    %c0_5 = arith.constant 0 : index
    %13 = vector.load %arg5[%c0_4, %c0_5] : memref<128x128xf32, #tpu.memory_space<vmem>>, vector<128x128xf32>
    %cst_6 = arith.constant dense<0.000000e+00> : vector<8x128xf32>
    %14 = tpu.matmul %10, %13, %cst_6 {dimension_numbers = #tpu.dot_dimension_numbers<[1], [0], [0], [1], [0, 0, 1, 1], [], []>} : vector<8x128xf32>, vector<128x128xf32>, vector<8x128xf32> -> vector<8x128xf32>
    %c0_7 = arith.constant 0 : index
    %c0_8 = arith.constant 0 : index
    %15 = vector.load %arg10[%c0_7, %c0_8] : memref<8x128xf32, #tpu.memory_space<vmem>>, vector<8x128xf32>
    %c0_9 = arith.constant 0 : index
    %c0_10 = arith.constant 0 : index
    %16 = vector.load %arg6[%c0_9, %c0_10] : memref<1x128xf32, #tpu.memory_space<vmem>>, vector<1x128xf32>
    %17 = vector.broadcast %16 : vector<1x128xf32> to vector<8x128xf32>
    %18 = arith.mulf %14, %17 : vector<8x128xf32>
    %19 = arith.addf %12, %18 : vector<8x128xf32>
    %20 = arith.addf %15, %19 : vector<8x128xf32>
    %c0_11 = arith.constant 0 : index
    %c0_12 = arith.constant 0 : index
    %21 = vector.load %arg10[%c0_11, %c0_12] : memref<8x128xf32, #tpu.memory_space<vmem>>, vector<8x128xf32>
    tpu.vector_store %arg10[%c0_11, %c0_12], %20 {strides = array<i32>} : memref<8x128xf32, #tpu.memory_space<vmem>>, vector<8x128xf32>,
    %c0_i32_13 = arith.constant 0 : i32
    %22 = arith.cmpi eq, %arg1, %c0_i32_13 : i32
    %23 = arith.extui %22 : i1 to i32
    %c0_i32_14 = arith.constant 0 : i32
    %24 = arith.cmpi ne, %23, %c0_i32_14 : i32
    scf.if %24 {
      %c0_15 = arith.constant 0 : index
      %c0_16 = arith.constant 0 : index
      %25 = vector.load %arg7[%c0_15, %c0_16] : memref<1x128xf32, #tpu.memory_space<vmem>>, vector<1x128xf32>
      %c0_17 = arith.constant 0 : index
      %c0_18 = arith.constant 0 : index
      %26 = vector.load %arg8[%c0_17, %c0_18] : memref<1x128xf32, #tpu.memory_space<vmem>>, vector<1x128xf32>
      %c0_19 = arith.constant 0 : index
      %c0_20 = arith.constant 0 : index
      %27 = vector.load %arg6[%c0_19, %c0_20] : memref<1x128xf32, #tpu.memory_space<vmem>>, vector<1x128xf32>
      %28 = arith.mulf %26, %27 : vector<1x128xf32>
      %29 = arith.addf %25, %28 : vector<1x128xf32>
      %c0_21 = arith.constant 0 : index
      %c0_22 = arith.constant 0 : index
      %30 = vector.load %arg10[%c0_21, %c0_22] : memref<8x128xf32, #tpu.memory_space<vmem>>, vector<8x128xf32>
      %31 = vector.broadcast %29 : vector<1x128xf32> to vector<8x128xf32>
      %32 = arith.addf %30, %31 : vector<8x128xf32>
      %c0_23 = arith.constant 0 : index
      %c0_24 = arith.constant 0 : index
      %33 = vector.load %arg9[%c0_23, %c0_24] : memref<8x128xf32, #tpu.memory_space<vmem>>, vector<8x128xf32>
      tpu.vector_store %arg9[%c0_23, %c0_24], %32 {strides = array<i32>} : memref<8x128xf32, #tpu.memory_space<vmem>>, vector<8x128xf32>,
    } else {
    }
    return
  }
  func.func @transform_0(%arg0: i32, %arg1: i32) -> (i32, i32) {
    %c0_i32 = arith.constant 0 : i32
    %c0_i32_0 = arith.constant 0 : i32
    %c0_i32_1 = arith.constant 0 : i32
    return %c0_i32, %c0_i32_0 : i32, i32
  }
  func.func @transform_1(%arg0: i32, %arg1: i32) -> (i32, i32) {
    %c0_i32 = arith.constant 0 : i32
    %c0_i32_0 = arith.constant 0 : i32
    %c0_i32_1 = arith.constant 0 : i32
    return %c0_i32, %c0_i32_0 : i32, i32
  }
  func.func @transform_2(%arg0: i32, %arg1: i32) -> (i32, i32) {
    %c0_i32 = arith.constant 0 : i32
    return %arg1, %arg0 : i32, i32
  }
  func.func @transform_3(%arg0: i32, %arg1: i32) -> (i32, i32) {
    %c0_i32 = arith.constant 0 : i32
    return %arg1, %arg0 : i32, i32
  }
  func.func @transform_4(%arg0: i32, %arg1: i32) -> (i32, i32) {
    %c0_i32 = arith.constant 0 : i32
    %c0_i32_0 = arith.constant 0 : i32
    return %c0_i32, %arg0 : i32, i32
  }
  func.func @transform_5(%arg0: i32, %arg1: i32) -> (i32, i32) {
    %c0_i32 = arith.constant 0 : i32
    %c0_i32_0 = arith.constant 0 : i32
    return %c0_i32, %arg0 : i32, i32
  }
  func.func @transform_6(%arg0: i32, %arg1: i32) -> (i32, i32) {
    %c0_i32 = arith.constant 0 : i32
    %c0_i32_0 = arith.constant 0 : i32
    return %c0_i32, %arg0 : i32, i32
  }
  func.func @transform_7(%arg0: i32, %arg1: i32) -> (i32, i32) {
    %c0_i32 = arith.constant 0 : i32
    %c0_i32_0 = arith.constant 0 : i32
    return %c0_i32, %arg0 : i32, i32
  }
}

</mosaic_0001>

<llo_original>
// kernel: tpu_custom_call.1
$region0: #{tpu_custom_call.1}
  #allocation0 [shape = 'u32[]', space=smem, size = 0x4, offset = 0x4, fixed_abs, tag = 'smem constant byte address 0x4 - core index']
  #allocation1 [shape = 'u32[72,128]{1,0:T(1,128)}', space=vmem, size = 0x9000, scoped, tag = 'internal scratch']
  #allocation2 [shape = 'f32[8,128]{1,0:T(8,128)}', space=vmem, size = 0x1000, scoped, tag = 'scratch operand']
  %s0 = inlined_call_operand.hbm [shape: f32[8,128], index: 0, kind: input, shape index: {}]
  %s1 = inlined_call_operand.hbm [shape: f32[1,128], index: 1, kind: input, shape index: {}]
  %s2 = inlined_call_operand.hbm [shape: f32[128,128], index: 2, kind: input, shape index: {}]
  %s3 = inlined_call_operand.hbm [shape: f32[128,128], index: 3, kind: input, shape index: {}]
  %s4 = inlined_call_operand.vmem [shape: f32[1,128], index: 4, kind: input, shape index: {}]
  %s5 = inlined_call_operand.vmem [shape: f32[1,128], index: 5, kind: input, shape index: {}]
  %s6 = inlined_call_operand.vmem [shape: f32[1,128], index: 6, kind: input, shape index: {}]
  %s7 = inlined_call_operand.hbm [shape: f32[8,128], index: 7, kind: output, shape index: {}]
  %s8 = sld [smem:[#allocation0]]
  $region62: #{tpu_custom_call.1} parent=0
    _
  %s10 = ssub.s32 1, %s8
  %s11 = scalar_select 0, %s10, %s8
  $region1: #{tpu_custom_call.1} parent=0
    #allocation3 [shape = 'u8[4096]{0}', space=vmem, size = 0x1000, scoped, tag = 'input window, operand 0, single buffered']
    #allocation4 [shape = 's32[1]{0}', space=sflag, size = 0x4, scoped, tag = 'scoped memory for tpu_custom_call.1']
    #allocation5 [shape = 's32[1]{0}', space=sflag, size = 0x4, scoped, tag = 'scoped memory for tpu_custom_call.1']
    #allocation6 [shape = 'u8[512]{0}', space=vmem, size = 0x400, scoped, tag = 'input window, operand 1, single buffered']
    #allocation7 [shape = 's32[1]{0}', space=sflag, size = 0x4, scoped, tag = 'scoped memory for tpu_custom_call.1']
    #allocation8 [shape = 'u8[65536]{0}', space=vmem, size = 0x10000, scoped, tag = 'input window, operand 2, single buffered']
    #allocation9 [shape = 'u8[65536]{0}', space=vmem, size = 0x10000, scoped, tag = 'input window, operand 3, single buffered']
    #allocation10 [shape = 's32[1]{0}', space=sflag, size = 0x4, scoped, tag = 'scoped memory for tpu_custom_call.1']
    #allocation11 [shape = 'u8[4096]{0}', space=vmem, size = 0x1000, scoped, tag = 'output window, operand 0, single buffered']
    %12 = vsyncpa [#allocation4], 0
    %13 = vsyncpa [#allocation7], 0
    %14 = vsyncpa [#allocation10], 0
    %15 = vsyncpa [#allocation5], 0
    // Predicated region
    $region2: #{tpu_custom_call.1} parent=1 // pred_check
      _
    $region3: #{tpu_custom_call.1} parent=1 // pred_check_branch
      %17 = sbr.rel (0) target = $region5
    $region4: #{tpu_custom_call.1} parent=1 // pred_region
      %19 = vsyncadd [#allocation4], 0
      %s21 = sshll.u32 %s0, 4
      %s22 = int_to_ptr.hbm [resolvable:$true] %s21
      %s23 = sshll.u32 [#allocation3], 4
      %s24 = int_to_ptr.vmem [resolvable:$true] %s23
      %26 = dma.hbm_to_vmem [thread:$0]  %s22, 128, %s24, [#allocation4]
    $region5: #{tpu_custom_call.1} parent=1 // pred_fallthru
      _
    // Predicated region
    $region6: #{tpu_custom_call.1} parent=1 // pred_check
      _
    $region7: #{tpu_custom_call.1} parent=1 // pred_check_branch
      %28 = sbr.rel (0) target = $region9
    $region8: #{tpu_custom_call.1} parent=1 // pred_region
      %30 = vsyncadd [#allocation7], 0
      %s32 = sshll.u32 %s1, 4
      %s33 = int_to_ptr.hbm [resolvable:$true] %s32
      %s34 = sshll.u32 [#allocation6], 4
      %s35 = int_to_ptr.vmem [resolvable:$true] %s34
      %37 = dma.hbm_to_vmem [thread:$0]  %s33, 16, %s35, [#allocation7]
    $region9: #{tpu_custom_call.1} parent=1 // pred_fallthru
      _
    // Predicated region
    $region10: #{tpu_custom_call.1} parent=1 // pred_check
      _
    $region11: #{tpu_custom_call.1} parent=1 // pred_check_branch
      %39 = sbr.rel (0) target = $region13
    $region12: #{tpu_custom_call.1} parent=1 // pred_region
      %41 = vsyncadd [#allocation7], 0
      %s42 = sshll.u32 %s2, 4
      %s43 = int_to_ptr.hbm [resolvable:$true] %s42
      %s44 = sshll.u32 [#allocation8], 4
      %s45 = int_to_ptr.vmem [resolvable:$true] %s44
      %50 = dma.hbm_to_vmem [thread:$0]  %s43, 2048, %s45, [#allocation7], 128, 128, 8
    $region13: #{tpu_custom_call.1} parent=1 // pred_fallthru
      _
    // Predicated region
    $region14: #{tpu_custom_call.1} parent=1 // pred_check
      _
    $region15: #{tpu_custom_call.1} parent=1 // pred_check_branch
      %52 = sbr.rel (0) target = $region17
    $region16: #{tpu_custom_call.1} parent=1 // pred_region
      %54 = vsyncadd [#allocation10], 0
      %s55 = sshll.u32 %s3, 4
      %s56 = int_to_ptr.hbm [resolvable:$true] %s55
      %s57 = sshll.u32 [#allocation9], 4
      %s58 = int_to_ptr.vmem [resolvable:$true] %s57
      %63 = dma.hbm_to_vmem [thread:$0]  %s56, 2048, %s58, [#allocation10], 128, 128, 8
    $region17: #{tpu_custom_call.1} parent=1 // pred_fallthru
      _
    // Predicated region
    $region18: #{tpu_custom_call.1} parent=1 // pred_check
      _
    $region19: #{tpu_custom_call.1} parent=1 // pred_check_branch
      %65 = sbr.rel (0) target = $region21
    $region20: #{tpu_custom_call.1} parent=1 // pred_region
      _
    $region21: #{tpu_custom_call.1} parent=1 // pred_fallthru
      _
    // Predicated region
    $region22: #{tpu_custom_call.1} parent=1 // pred_check
      _
    $region23: #{tpu_custom_call.1} parent=1 // pred_check_branch
      %67 = sbr.rel (0) target = $region25
    $region24: #{tpu_custom_call.1} parent=1 // pred_region
      _
    $region25: #{tpu_custom_call.1} parent=1 // pred_fallthru
      _
    // Predicated region
    $region26: #{tpu_custom_call.1} parent=1 // pred_check
      _
    $region27: #{tpu_custom_call.1} parent=1 // pred_check_branch
      %69 = sbr.rel (0) target = $region29
    $region28: #{tpu_custom_call.1} parent=1 // pred_region
      _
    $region29: #{tpu_custom_call.1} parent=1 // pred_fallthru
      _
    // Predicated region
    $region30: #{tpu_custom_call.1} parent=1 // pred_check
      _
    $region31: #{tpu_custom_call.1} parent=1 // pred_check_branch
      %71 = sbr.rel (0) target = $region33
    $region32: #{tpu_custom_call.1} parent=1 // pred_region
      %73 = dma.done [#allocation4], 128
    $region33: #{tpu_custom_call.1} parent=1 // pred_fallthru
      _
    // Predicated region
    $region34: #{tpu_custom_call.1} parent=1 // pred_check
      _
    $region35: #{tpu_custom_call.1} parent=1 // pred_check_branch
      %75 = sbr.rel (0) target = $region37
    $region36: #{tpu_custom_call.1} parent=1 // pred_region
      %77 = dma.done [#allocation7], 16
    $region37: #{tpu_custom_call.1} parent=1 // pred_fallthru
      _
    // Predicated region
    $region38: #{tpu_custom_call.1} parent=1 // pred_check
      _
    $region39: #{tpu_custom_call.1} parent=1 // pred_check_branch
      %79 = sbr.rel (0) target = $region41
    $region40: #{tpu_custom_call.1} parent=1 // pred_region
      %81 = dma.done [#allocation7], 2048
    $region41: #{tpu_custom_call.1} parent=1 // pred_fallthru
      _
    // Predicated region
    $region42: #{tpu_custom_call.1} parent=1 // pred_check
      _
    $region43: #{tpu_custom_call.1} parent=1 // pred_check_branch
      %83 = sbr.rel (0) target = $region45
    $region44: #{tpu_custom_call.1} parent=1 // pred_region
      %85 = dma.done [#allocation10], 2048
    $region45: #{tpu_custom_call.1} parent=1 // pred_fallthru
      _
    %p86 = scmp.eq.s32.totalorder 0, 0
    // Predicated region
    $region46: #{tpu_custom_call.1} parent=1 // pred_check
      %p87 = pneg %p86
    $region47: #{tpu_custom_call.1} parent=1 // pred_check_branch
      %89 = sbr.rel (%p87) target = $region49
    $region48: #{tpu_custom_call.1} parent=1 // pred_region
      %90 = vst [vmem:[#allocation2] sm:$0xff] 0.0
    $region49: #{tpu_custom_call.1} parent=1 // pred_fallthru
      _
    %s91 = smul.u32 0, 128
    %s92 = sshra.s32 %s91, 7
    %s93 = sand.u32 %s91, 127
    %s94 = scalar_lea.vmem [#allocation3], %s92
    %v95 = vld [vmem:[%s94] sm:$0xff]
    %s96 = scalar_lea.vmem [#allocation6], %s92
    %v97 = vld [vmem:[%s96] sm:$0x1]
    %v99 = vperm.slane %v97, 0
    %v101 = vmul.f32 %v95, %v99
    %v102 = vld [vmem:[#allocation8] sm:$0xff]
    %v103 = vld [vmem:[#allocation8 + $0x8] sm:$0xff]
    %v104 = vld [vmem:[#allocation8 + $0x10] sm:$0xff]
    %v105 = vld [vmem:[#allocation8 + $0x18] sm:$0xff]
    %v106 = vld [vmem:[#allocation8 + $0x20] sm:$0xff]
    %v107 = vld [vmem:[#allocation8 + $0x28] sm:$0xff]
    %v108 = vld [vmem:[#allocation8 + $0x30] sm:$0xff]
    %v109 = vld [vmem:[#allocation8 + $0x38] sm:$0xff]
    %v110 = vld [vmem:[#allocation8 + $0x40] sm:$0xff]
    %v111 = vld [vmem:[#allocation8 + $0x48] sm:$0xff]
    %v112 = vld [vmem:[#allocation8 + $0x50] sm:$0xff]
    %v113 = vld [vmem:[#allocation8 + $0x58] sm:$0xff]
    %v114 = vld [vmem:[#allocation8 + $0x60] sm:$0xff]
    %v115 = vld [vmem:[#allocation8 + $0x68] sm:$0xff]
    %v116 = vld [vmem:[#allocation8 + $0x70] sm:$0xff]
    %v117 = vld [vmem:[#allocation8 + $0x78] sm:$0xff]
    %v118 = vld [vmem:[#allocation9] sm:$0xff]
    %v119 = vld [vmem:[#allocation9 + $0x8] sm:$0xff]
    %v120 = vld [vmem:[#allocation9 + $0x10] sm:$0xff]
    %v121 = vld [vmem:[#allocation9 + $0x18] sm:$0xff]
    %v122 = vld [vmem:[#allocation9 + $0x20] sm:$0xff]
    %v123 = vld [vmem:[#allocation9 + $0x28] sm:$0xff]
    %v124 = vld [vmem:[#allocation9 + $0x30] sm:$0xff]
    %v125 = vld [vmem:[#allocation9 + $0x38] sm:$0xff]
    %v126 = vld [vmem:[#allocation9 + $0x40] sm:$0xff]
    %v127 = vld [vmem:[#allocation9 + $0x48] sm:$0xff]
    %v128 = vld [vmem:[#allocation9 + $0x50] sm:$0xff]
    %v129 = vld [vmem:[#allocation9 + $0x58] sm:$0xff]
    %v130 = vld [vmem:[#allocation9 + $0x60] sm:$0xff]
    %v131 = vld [vmem:[#allocation9 + $0x68] sm:$0xff]
    %v132 = vld [vmem:[#allocation9 + $0x70] sm:$0xff]
    %v133 = vld [vmem:[#allocation9 + $0x78] sm:$0xff]
    %134 = vmatpush.msra.mxu0 %v133
    %135 = vmatpush.msra.mxu0 %v132
    %136 = vmatpush.msra.mxu0 %v131
    %137 = vmatpush.msra.mxu0 %v130
    %138 = vmatpush.msra.mxu0 %v129
    %139 = vmatpush.msra.mxu0 %v128
    %140 = vmatpush.msra.mxu0 %v127
    %141 = vmatpush.msra.mxu0 %v126
    %142 = vmatpush.msra.mxu0 %v125
    %143 = vmatpush.msra.mxu0 %v124
    %144 = vmatpush.msra.mxu0 %v123
    %145 = vmatpush.msra.mxu0 %v122
    %146 = vmatpush.msra.mxu0 %v121
    %147 = vmatpush.msra.mxu0 %v120
    %148 = vmatpush.msra.mxu0 %v119
    %149 = vmatpush.msra.mxu0 %v118
    %150 = vmatmul.f32.gmra.mxu0 %v101
    %v151 = vpop.f32.mrf.mxu0
    %v152 = vadd.f32 0.0, %v151
    %153 = vdwg.mxu0
    %v154 = vld [vmem:[#allocation2] sm:$0xff]
    %v155 = vld [vmem:[%s4] sm:$0x1]
    %v157 = vperm.slane %v155, 0
    %v159 = vmul.f32 %v152, %v157
    %160 = vmatpush.msra.mxu0 %v117
    %161 = vmatpush.msra.mxu0 %v116
    %162 = vmatpush.msra.mxu0 %v115
    %163 = vmatpush.msra.mxu0 %v114
    %164 = vmatpush.msra.mxu0 %v113
    %165 = vmatpush.msra.mxu0 %v112
    %166 = vmatpush.msra.mxu0 %v111
    %167 = vmatpush.msra.mxu0 %v110
    %168 = vmatpush.msra.mxu0 %v109
    %169 = vmatpush.msra.mxu0 %v108
    %170 = vmatpush.msra.mxu0 %v107
    %171 = vmatpush.msra.mxu0 %v106
    %172 = vmatpush.msra.mxu0 %v105
    %173 = vmatpush.msra.mxu0 %v104
    %174 = vmatpush.msra.mxu0 %v103
    %175 = vmatpush.msra.mxu0 %v102
    %176 = vmatmul.f32.gmra.mxu0 %v95
    %v177 = vpop.f32.mrf.mxu0
    %v178 = vadd.f32 %v159, %v177
    %179 = vdwg.mxu0
    %v180 = vadd.f32 %v154, %v178
    %181 = vst [vmem:[#allocation2] sm:$0xff] %v180
    // Predicated region
    $region50: #{tpu_custom_call.1} parent=1 // pred_check
      %p182 = pneg %p86
    $region51: #{tpu_custom_call.1} parent=1 // pred_check_branch
      %184 = sbr.rel (%p182) target = $region53
    $region52: #{tpu_custom_call.1} parent=1 // pred_region
      %v185 = vld [vmem:[%s5] sm:$0x1]
      %v186 = vld [vmem:[%s6] sm:$0x1]
      %v187 = vld [vmem:[%s4] sm:$0x1]
      %v188 = vmul.f32 %v186, %v187
      %v189 = vadd.f32 %v185, %v188
      %v190 = vld [vmem:[#allocation2] sm:$0xff]
      %v192 = vperm.slane %v189, 0
      %v194 = vadd.f32 %v190, %v192
      %195 = vst [vmem:[#allocation11] sm:$0xff] %v194
    $region53: #{tpu_custom_call.1} parent=1 // pred_fallthru
      _
    // Predicated region
    $region54: #{tpu_custom_call.1} parent=1 // pred_check
      _
    $region55: #{tpu_custom_call.1} parent=1 // pred_check_branch
      %197 = sbr.rel (0) target = $region57
    $region56: #{tpu_custom_call.1} parent=1 // pred_region
      %199 = vsyncadd [#allocation5], 0
      %s201 = sshll.u32 [#allocation11], 4
      %s202 = int_to_ptr.vmem [resolvable:$true] %s201
      %s203 = sshll.u32 %s7, 4
      %s204 = int_to_ptr.hbm [resolvable:$true] %s203
      %206 = dma.vmem_to_hbm [thread:$0]  %s202, 128, %s204, [#allocation5]
    $region57: #{tpu_custom_call.1} parent=1 // pred_fallthru
      _
    // Predicated region
    $region58: #{tpu_custom_call.1} parent=1 // pred_check
      _
    $region59: #{tpu_custom_call.1} parent=1 // pred_check_branch
      %208 = sbr.rel (0) target = $region61
    $region60: #{tpu_custom_call.1} parent=1 // pred_region
      %210 = dma.done [#allocation5], 128
    $region61: #{tpu_custom_call.1} parent=1 // pred_fallthru
      _
    %211 = vsyncpa [#allocation4], 1
    %212 = vsyncpa [#allocation7], 1
    %213 = vsyncpa [#allocation10], 1
    %214 = vsyncpa [#allocation5], 1

</llo_original>
